<compile_context>
chip_gen: v5e
topology: v5e:2x2
jax: 0.10.0
libtpu: 0.0.40
codegen_flags: <defaults>
</compile_context>

<pallas_src>
import math

import jax
import jax.numpy as jnp
from jax.experimental import pallas as pl
from jax.experimental.pallas import tpu as pltpu


def _rgru_cell_diag_kernel(x_ref, h_ref, wx_ref, wh_ref, b_ref, o_ref):
    """One row-tile of the RGRU cell (diag=True).

    x_ref : [tm, In]     input rows (f32 or bf16 MXU operand)
    h_ref : [tm, H]      previous hidden state (f32; also feeds log(h))
    wx_ref: [3, In, H]   |Wx| pre-split per gate (r, i, n)
    wh_ref: [3, H,  H]   |Wh| pre-split per gate
    b_ref : [3, 1,  H]   |bias| pre-split per gate
    o_ref : [tm, H]      hy
    """
    x = x_ref[...]
    h = h_ref[...]                       # f32
    h_mm = h.astype(wh_ref.dtype)        # MXU operand dtype (no-op when f32)

    # PosLinear projections: one MXU matmul per gate so every gate tensor
    # starts at lane 0 -> no sub-vreg lane slicing downstream.
    i_r = jnp.dot(x, wx_ref[0], preferred_element_type=jnp.float32)
    i_i = jnp.dot(x, wx_ref[1], preferred_element_type=jnp.float32)
    i_n = jnp.dot(x, wx_ref[2], preferred_element_type=jnp.float32)
    h_r = jnp.dot(h_mm, wh_ref[0], preferred_element_type=jnp.float32)
    h_i = jnp.dot(h_mm, wh_ref[1], preferred_element_type=jnp.float32)
    h_n = jnp.dot(h_mm, wh_ref[2], preferred_element_type=jnp.float32)

    b_r = b_ref[0]                       # [1, H]
    b_i = b_ref[1]
    b_n = b_ref[2]

    def _sigmoid_pos(z):
        # z >= 0 on this path, so 1 + exp(-z) is in [1, 2]; the approx EUP
        # reciprocal co-issues in the EUP slot and is plenty accurate.
        return pl.reciprocal(1.0 + jnp.exp(-z), approx=True)

    # exp(log(a) + log(b)) == a * b for the strictly positive activations on
    # this path; plain products cut EUP work by >2x and are more accurate.
    resetgate = _sigmoid_pos(b_r * i_r * h_r)
    inputgate = _sigmoid_pos(b_i * i_i * h_i)
    z = b_n * i_n * (resetgate * h_n)                  # z >= 0
    newgate = z + jnp.log(1.0 + jnp.exp(-z))           # softplus, stable z >= 0

    hy = jnp.exp((1.0 - inputgate) * jnp.log(newgate) + inputgate * jnp.log(h))
    o_ref[...] = hy.astype(o_ref.dtype)


def rgru_cell_diag(x, hidden, x2h_weight, h2h_weight, bias, *,
                   tile_m=512, mxu_dtype=jnp.float32):
    """Fused RGRUCell (diag=True) forward step.

    x:          [M, input_size]   (or any [..., input_size]; flattened as torch.view)
    hidden:     [M, hidden_size]
    x2h_weight: [input_size, 3*hidden_size]   (PosLinear weight)
    h2h_weight: [hidden_size, 3*hidden_size]  (PosLinear weight)
    bias:       [3*hidden_size]
    returns hy: [M, hidden_size] (float32)
    """
    in_dim, three_h = x2h_weight.shape
    h_dim = hidden.shape[-1]
    assert three_h == 3 * h_dim

    x2d = x.reshape(-1, in_dim)
    h2d = hidden.reshape(-1, h_dim).astype(jnp.float32)
    m = x2d.shape[0]

    # |W| / |b| hoisted out of the kernel (loop-invariant across timesteps; XLA
    # CSEs them when the cell is scanned over a sequence) and pre-split into
    # per-gate slabs so the kernel never slices inside a 128-lane vreg.
    wx = jnp.abs(x2h_weight).reshape(in_dim, 3, h_dim).transpose(1, 0, 2)  # [3,In,H]
    wh = jnp.abs(h2h_weight).reshape(h_dim, 3, h_dim).transpose(1, 0, 2)   # [3,H,H]
    b3 = jnp.abs(bias).reshape(3, 1, h_dim).astype(jnp.float32)            # [3,1,H]

    # Optional bf16 MXU operands (v6e/v7x native); gate math stays f32.
    x_mm = x2d.astype(mxu_dtype)
    wx = wx.astype(mxu_dtype)
    wh = wh.astype(mxu_dtype)

    # Row tiling: whole-array VMEM blocks (no pipeline scaffolding) for small
    # M; a parallel row grid otherwise so v7x's two TensorCores both get work
    # and the working set stays small relative to its 64 MiB VMEM.
    if m <= tile_m:
        tm, grid_m, pad = m, 1, 0
    else:
        assert tile_m % 8 == 0, "tile_m must be a sublane multiple"
        tm = tile_m
        grid_m = pl.cdiv(m, tile_m)
        pad = grid_m * tile_m - m
        if pad:
            # Pad dead rows with 1.0 so matmul/log on them stays finite.
            x_mm = jnp.pad(x_mm, ((0, pad), (0, 0)), constant_values=1.0)
            h2d = jnp.pad(h2d, ((0, pad), (0, 0)), constant_values=1.0)
    m_pad = m + pad

    flops = 2 * m * (in_dim + h_dim) * three_h + 16 * m * h_dim
    transcendentals = 9 * m * h_dim
    bytes_accessed = (x_mm.size * x_mm.dtype.itemsize
                      + h2d.size * 4
                      + wx.size * wx.dtype.itemsize
                      + wh.size * wh.dtype.itemsize
                      + b3.size * 4
                      + m_pad * h_dim * 4)
    cost = pl.CostEstimate(flops=flops, transcendentals=transcendentals,
                           bytes_accessed=bytes_accessed)
    out_shape = jax.ShapeDtypeStruct((m_pad, h_dim), jnp.float32)

    if grid_m == 1:
        # Gridless: everything is a whole-array VMEM block.
        vmem = pl.BlockSpec(memory_space=pltpu.MemorySpace.VMEM)
        out = pl.pallas_call(
            _rgru_cell_diag_kernel,
            out_shape=out_shape,
            in_specs=[vmem] * 5,
            out_specs=vmem,
            cost_estimate=cost,
        )(x_mm, h2d, wx, wh, b3)
    else:
        out = pl.pallas_call(
            _rgru_cell_diag_kernel,
            out_shape=out_shape,
            grid=(grid_m,),
            in_specs=[
                pl.BlockSpec((tm, in_dim), lambda i: (i, 0)),
                pl.BlockSpec((tm, h_dim), lambda i: (i, 0)),
                # Constant index_map -> weights/bias stay VMEM-resident, no
                # per-row-tile re-DMA.
                pl.BlockSpec((3, in_dim, h_dim), lambda i: (0, 0, 0)),
                pl.BlockSpec((3, h_dim, h_dim), lambda i: (0, 0, 0)),
                pl.BlockSpec((3, 1, h_dim), lambda i: (0, 0, 0)),
            ],
            out_specs=pl.BlockSpec((tm, h_dim), lambda i: (i, 0)),
            compiler_params=pltpu.CompilerParams(
                dimension_semantics=("parallel",)),
            cost_estimate=cost,
        )(x_mm, h2d, wx, wh, b3)

    return out[:m] if pad else out


def rgru_cell_diag_ref(x, hidden, x2h_weight, h2h_weight, bias):
    """Pure-JAX reference, faithful to torch RGRUCell.forward (diag=True)."""
    x2d = x.reshape(-1, x2h_weight.shape[0])
    gate_x = jnp.matmul(x2d, jnp.abs(x2h_weight))
    gate_h = jnp.matmul(hidden, jnp.abs(h2h_weight))
    h = hidden.shape[-1]
    i_r, i_i, i_n = gate_x[:, :h], gate_x[:, h:2 * h], gate_x[:, 2 * h:]
    h_r, h_i, h_n = gate_h[:, :h], gate_h[:, h:2 * h], gate_h[:, 2 * h:]
    b = jnp.abs(bias)
    b_r, b_i, b_n = b[:h], b[h:2 * h], b[2 * h:]
    resetgate = jax.nn.sigmoid(b_r * jnp.exp(jnp.log(i_r) + jnp.log(h_r)))
    inputgate = jax.nn.sigmoid(b_i * jnp.exp(jnp.log(i_i) + jnp.log(h_i)))
    newgate = jax.nn.softplus(b_n * jnp.exp(jnp.log(i_n) + jnp.log(resetgate * h_n)))
    return jnp.exp(jnp.log(newgate) * (1.0 - inputgate) + inputgate * jnp.log(hidden))


if __name__ == "__main__":
    key = jax.random.PRNGKey(0)
    kx, kh, kwx, kwh, kb = jax.random.split(key, 5)

    # Small shapes consistent with the module: 2x8 rows flattened into the
    # cell batch, input_size=48, hidden_size=32.
    input_size, hidden_size = 48, 32
    batch, seq = 2, 8
    m = batch * seq

    std = 1.0 / math.sqrt(hidden_size)   # matches reset_parameters()

    # diag=True takes log() of the gate activations and of hidden, so the
    # module implicitly requires strictly positive x / hidden.
    x = jax.random.uniform(kx, (m, input_size), jnp.float32, 0.1, 1.0)
    hidden = jax.random.uniform(kh, (m, hidden_size), jnp.float32, 0.1, 1.0)
    x2h_w = jax.random.uniform(kwx, (input_size, 3 * hidden_size), jnp.float32, -std, std)
    h2h_w = jax.random.uniform(kwh, (hidden_size, 3 * hidden_size), jnp.float32, -std, std)
    bias = jax.random.uniform(kb, (3 * hidden_size,), jnp.float32, -std, std)

    hy_ref = rgru_cell_diag_ref(x, hidden, x2h_w, h2h_w, bias)

    # Tolerance note: the kernel uses the mathematically-equivalent product
    # form of the gates plus an approximate EUP reciprocal in the sigmoid, so
    # allow slightly looser-than-ulp agreement with the log/exp reference.
    atol, rtol = 2e-3, 1e-2

    # 1) Small-M gridless whole-array path.
    hy = rgru_cell_diag(x, hidden, x2h_w, h2h_w, bias)
    jax.block_until_ready(hy)
    assert hy.shape == (m, hidden_size)
    assert jnp.allclose(hy, hy_ref, atol=atol, rtol=rtol), float(
        jnp.max(jnp.abs(hy - hy_ref)))

    # 2) Parallel row-grid path (exercised with a tiny tile for testing).
    hy_g = rgru_cell_diag(x, hidden, x2h_w, h2h_w, bias, tile_m=8)
    jax.block_until_ready(hy_g)
    assert hy_g.shape == (m, hidden_size)
    assert jnp.allclose(hy_g, hy_ref, atol=atol, rtol=rtol), float(
        jnp.max(jnp.abs(hy_g - hy_ref)))

    print("KERNEL_OK")
</pallas_src>

<mosaic_0001>
module attributes {stable_mosaic.version = 11 : i64} {
  func.func @_rgru_cell_diag_kernel(%arg0: memref<16x48xf32, #tpu.memory_space<vmem>>, %arg1: memref<16x32xf32, #tpu.memory_space<vmem>>, %arg2: memref<3x48x32xf32, #tpu.memory_space<vmem>>, %arg3: memref<3x32x32xf32, #tpu.memory_space<vmem>>, %arg4: memref<3x1x32xf32, #tpu.memory_space<vmem>>, %arg5: memref<16x32xf32, #tpu.memory_space<vmem>>) attributes {dimension_semantics = [], scalar_prefetch = 0 : i64, scratch_operands = 0 : i64, tpu.core_type = #tpu.core_type<tc>} {
    %c0 = arith.constant 0 : index
    %c0_0 = arith.constant 0 : index
    %0 = vector.load %arg0[%c0, %c0_0] : memref<16x48xf32, #tpu.memory_space<vmem>>, vector<16x48xf32>
    %c0_1 = arith.constant 0 : index
    %c0_2 = arith.constant 0 : index
    %1 = vector.load %arg1[%c0_1, %c0_2] : memref<16x32xf32, #tpu.memory_space<vmem>>, vector<16x32xf32>
    %c0_3 = arith.constant 0 : index
    %c0_4 = arith.constant 0 : index
    %c0_5 = arith.constant 0 : index
    %2 = vector.load %arg2[%c0_3, %c0_4, %c0_5] : memref<3x48x32xf32, #tpu.memory_space<vmem>>, vector<1x48x32xf32>
    %3 = vector.shape_cast %2 : vector<1x48x32xf32> to vector<48x32xf32>
    %cst = arith.constant dense<0.000000e+00> : vector<16x32xf32>
    %4 = tpu.matmul %0, %3, %cst {dimension_numbers = #tpu.dot_dimension_numbers<[1], [0], [0], [1], [0, 0, 1, 1], [], []>} : vector<16x48xf32>, vector<48x32xf32>, vector<16x32xf32> -> vector<16x32xf32>
    %c1 = arith.constant 1 : index
    %c0_6 = arith.constant 0 : index
    %c0_7 = arith.constant 0 : index
    %5 = vector.load %arg2[%c1, %c0_6, %c0_7] : memref<3x48x32xf32, #tpu.memory_space<vmem>>, vector<1x48x32xf32>
    %6 = vector.shape_cast %5 : vector<1x48x32xf32> to vector<48x32xf32>
    %cst_8 = arith.constant dense<0.000000e+00> : vector<16x32xf32>
    %7 = tpu.matmul %0, %6, %cst_8 {dimension_numbers = #tpu.dot_dimension_numbers<[1], [0], [0], [1], [0, 0, 1, 1], [], []>} : vector<16x48xf32>, vector<48x32xf32>, vector<16x32xf32> -> vector<16x32xf32>
    %c2 = arith.constant 2 : index
    %c0_9 = arith.constant 0 : index
    %c0_10 = arith.constant 0 : index
    %8 = vector.load %arg2[%c2, %c0_9, %c0_10] : memref<3x48x32xf32, #tpu.memory_space<vmem>>, vector<1x48x32xf32>
    %9 = vector.shape_cast %8 : vector<1x48x32xf32> to vector<48x32xf32>
    %cst_11 = arith.constant dense<0.000000e+00> : vector<16x32xf32>
    %10 = tpu.matmul %0, %9, %cst_11 {dimension_numbers = #tpu.dot_dimension_numbers<[1], [0], [0], [1], [0, 0, 1, 1], [], []>} : vector<16x48xf32>, vector<48x32xf32>, vector<16x32xf32> -> vector<16x32xf32>
    %c0_12 = arith.constant 0 : index
    %c0_13 = arith.constant 0 : index
    %c0_14 = arith.constant 0 : index
    %11 = vector.load %arg3[%c0_12, %c0_13, %c0_14] : memref<3x32x32xf32, #tpu.memory_space<vmem>>, vector<1x32x32xf32>
    %12 = vector.shape_cast %11 : vector<1x32x32xf32> to vector<32x32xf32>
    %cst_15 = arith.constant dense<0.000000e+00> : vector<16x32xf32>
    %13 = tpu.matmul %1, %12, %cst_15 {dimension_numbers = #tpu.dot_dimension_numbers<[1], [0], [0], [1], [0, 0, 1, 1], [], []>} : vector<16x32xf32>, vector<32x32xf32>, vector<16x32xf32> -> vector<16x32xf32>
    %c1_16 = arith.constant 1 : index
    %c0_17 = arith.constant 0 : index
    %c0_18 = arith.constant 0 : index
    %14 = vector.load %arg3[%c1_16, %c0_17, %c0_18] : memref<3x32x32xf32, #tpu.memory_space<vmem>>, vector<1x32x32xf32>
    %15 = vector.shape_cast %14 : vector<1x32x32xf32> to vector<32x32xf32>
    %cst_19 = arith.constant dense<0.000000e+00> : vector<16x32xf32>
    %16 = tpu.matmul %1, %15, %cst_19 {dimension_numbers = #tpu.dot_dimension_numbers<[1], [0], [0], [1], [0, 0, 1, 1], [], []>} : vector<16x32xf32>, vector<32x32xf32>, vector<16x32xf32> -> vector<16x32xf32>
    %c2_20 = arith.constant 2 : index
    %c0_21 = arith.constant 0 : index
    %c0_22 = arith.constant 0 : index
    %17 = vector.load %arg3[%c2_20, %c0_21, %c0_22] : memref<3x32x32xf32, #tpu.memory_space<vmem>>, vector<1x32x32xf32>
    %18 = vector.shape_cast %17 : vector<1x32x32xf32> to vector<32x32xf32>
    %cst_23 = arith.constant dense<0.000000e+00> : vector<16x32xf32>
    %19 = tpu.matmul %1, %18, %cst_23 {dimension_numbers = #tpu.dot_dimension_numbers<[1], [0], [0], [1], [0, 0, 1, 1], [], []>} : vector<16x32xf32>, vector<32x32xf32>, vector<16x32xf32> -> vector<16x32xf32>
    %c0_24 = arith.constant 0 : index
    %c0_25 = arith.constant 0 : index
    %c0_26 = arith.constant 0 : index
    %20 = vector.load %arg4[%c0_24, %c0_25, %c0_26] : memref<3x1x32xf32, #tpu.memory_space<vmem>>, vector<1x1x32xf32>
    %21 = vector.shape_cast %20 : vector<1x1x32xf32> to vector<1x32xf32>
    %c1_27 = arith.constant 1 : index
    %c0_28 = arith.constant 0 : index
    %c0_29 = arith.constant 0 : index
    %22 = vector.load %arg4[%c1_27, %c0_28, %c0_29] : memref<3x1x32xf32, #tpu.memory_space<vmem>>, vector<1x1x32xf32>
    %23 = vector.shape_cast %22 : vector<1x1x32xf32> to vector<1x32xf32>
    %c2_30 = arith.constant 2 : index
    %c0_31 = arith.constant 0 : index
    %c0_32 = arith.constant 0 : index
    %24 = vector.load %arg4[%c2_30, %c0_31, %c0_32] : memref<3x1x32xf32, #tpu.memory_space<vmem>>, vector<1x1x32xf32>
    %25 = vector.shape_cast %24 : vector<1x1x32xf32> to vector<1x32xf32>
    %26 = vector.broadcast %21 : vector<1x32xf32> to vector<16x32xf32>
    %27 = arith.mulf %26, %4 : vector<16x32xf32>
    %28 = arith.mulf %27, %13 : vector<16x32xf32>
    %cst_33 = arith.constant 0.000000e+00 : f32
    %29 = vector.broadcast %cst_33 : f32 to vector<16x32xf32>
    %30 = arith.subf %29, %28 : vector<16x32xf32>
    %31 = math.exp %30 : vector<16x32xf32>
    %cst_34 = arith.constant 1.000000e+00 : f32
    %32 = vector.broadcast %cst_34 : f32 to vector<16x32xf32>
    %33 = arith.addf %32, %31 : vector<16x32xf32>
    %34 = tpu.reciprocal %33 {approx = true} : vector<16x32xf32> -> vector<16x32xf32>
    %35 = vector.broadcast %23 : vector<1x32xf32> to vector<16x32xf32>
    %36 = arith.mulf %35, %7 : vector<16x32xf32>
    %37 = arith.mulf %36, %16 : vector<16x32xf32>
    %cst_35 = arith.constant 0.000000e+00 : f32
    %38 = vector.broadcast %cst_35 : f32 to vector<16x32xf32>
    %39 = arith.subf %38, %37 : vector<16x32xf32>
    %40 = math.exp %39 : vector<16x32xf32>
    %cst_36 = arith.constant 1.000000e+00 : f32
    %41 = vector.broadcast %cst_36 : f32 to vector<16x32xf32>
    %42 = arith.addf %41, %40 : vector<16x32xf32>
    %43 = tpu.reciprocal %42 {approx = true} : vector<16x32xf32> -> vector<16x32xf32>
    %44 = vector.broadcast %25 : vector<1x32xf32> to vector<16x32xf32>
    %45 = arith.mulf %44, %10 : vector<16x32xf32>
    %46 = arith.mulf %34, %19 : vector<16x32xf32>
    %47 = arith.mulf %45, %46 : vector<16x32xf32>
    %cst_37 = arith.constant 0.000000e+00 : f32
    %48 = vector.broadcast %cst_37 : f32 to vector<16x32xf32>
    %49 = arith.subf %48, %47 : vector<16x32xf32>
    %50 = math.exp %49 : vector<16x32xf32>
    %cst_38 = arith.constant 1.000000e+00 : f32
    %51 = vector.broadcast %cst_38 : f32 to vector<16x32xf32>
    %52 = arith.addf %51, %50 : vector<16x32xf32>
    %53 = math.log %52 : vector<16x32xf32>
    %54 = arith.addf %47, %53 : vector<16x32xf32>
    %cst_39 = arith.constant 1.000000e+00 : f32
    %55 = vector.broadcast %cst_39 : f32 to vector<16x32xf32>
    %56 = arith.subf %55, %43 : vector<16x32xf32>
    %57 = math.log %54 : vector<16x32xf32>
    %58 = arith.mulf %56, %57 : vector<16x32xf32>
    %59 = math.log %1 : vector<16x32xf32>
    %60 = arith.mulf %43, %59 : vector<16x32xf32>
    %61 = arith.addf %58, %60 : vector<16x32xf32>
    %62 = math.exp %61 : vector<16x32xf32>
    %c0_40 = arith.constant 0 : index
    %c0_41 = arith.constant 0 : index
    %63 = vector.load %arg5[%c0_40, %c0_41] : memref<16x32xf32, #tpu.memory_space<vmem>>, vector<16x32xf32>
    tpu.vector_store %arg5[%c0_40, %c0_41], %62 {strides = array<i32>} : memref<16x32xf32, #tpu.memory_space<vmem>>, vector<16x32xf32>,
    return
  }
}

</mosaic_0001>

<llo_original>
// kernel: tpu_custom_call.1
$region0: #{tpu_custom_call.1}
  #allocation0 [shape = 'u32[]', space=smem, size = 0x4, offset = 0x4, fixed_abs, tag = 'smem constant byte address 0x4 - core index']
  #allocation1 [shape = 'u32[72,128]{1,0:T(1,128)}', space=vmem, size = 0x9000, scoped, tag = 'internal scratch']
  %s0 = inlined_call_operand.vmem [shape: f32[16,48], index: 0, kind: input, shape index: {}]
  %s1 = inlined_call_operand.vmem [shape: f32[16,32], index: 1, kind: input, shape index: {}]
  %s2 = inlined_call_operand.vmem [shape: f32[3,48,32], index: 2, kind: input, shape index: {}]
  %s3 = inlined_call_operand.vmem [shape: f32[3,32,32], index: 3, kind: input, shape index: {}]
  %s4 = inlined_call_operand.vmem [shape: f32[3,1,32], index: 4, kind: input, shape index: {}]
  %s5 = inlined_call_operand.hbm [shape: f32[16,32], index: 5, kind: output, shape index: {}]
  %s6 = sld [smem:[#allocation0]]
  $region30: #{tpu_custom_call.1} parent=0
    _
  %s8 = ssub.s32 1, %s6
  %s9 = scalar_select 0, %s8, %s6
  $region1: #{tpu_custom_call.1} parent=0
    #allocation2 [shape = 'u8[8192]{0}', space=vmem, size = 0x2000, scoped, tag = 'output window, operand 0, single buffered']
    #allocation3 [shape = 's32[1]{0}', space=sflag, size = 0x4, scoped, tag = 'scoped memory for tpu_custom_call.1']
    %10 = vsyncpa [#allocation3], 0
    // Predicated region
    $region2: #{tpu_custom_call.1} parent=1 // pred_check
      _
    $region3: #{tpu_custom_call.1} parent=1 // pred_check_branch
      %12 = sbr.rel (0) target = $region5
    $region4: #{tpu_custom_call.1} parent=1 // pred_region
      _
    $region5: #{tpu_custom_call.1} parent=1 // pred_fallthru
      _
    // Predicated region
    $region6: #{tpu_custom_call.1} parent=1 // pred_check
      _
    $region7: #{tpu_custom_call.1} parent=1 // pred_check_branch
      %14 = sbr.rel (0) target = $region9
    $region8: #{tpu_custom_call.1} parent=1 // pred_region
      _
    $region9: #{tpu_custom_call.1} parent=1 // pred_fallthru
      _
    // Predicated region
    $region10: #{tpu_custom_call.1} parent=1 // pred_check
      _
    $region11: #{tpu_custom_call.1} parent=1 // pred_check_branch
      %16 = sbr.rel (0) target = $region13
    $region12: #{tpu_custom_call.1} parent=1 // pred_region
      _
    $region13: #{tpu_custom_call.1} parent=1 // pred_fallthru
      _
    // Predicated region
    $region14: #{tpu_custom_call.1} parent=1 // pred_check
      _
    $region15: #{tpu_custom_call.1} parent=1 // pred_check_branch
      %18 = sbr.rel (0) target = $region17
    $region16: #{tpu_custom_call.1} parent=1 // pred_region
      _
    $region17: #{tpu_custom_call.1} parent=1 // pred_fallthru
      _
    // Predicated region
    $region18: #{tpu_custom_call.1} parent=1 // pred_check
      _
    $region19: #{tpu_custom_call.1} parent=1 // pred_check_branch
      %20 = sbr.rel (0) target = $region21
    $region20: #{tpu_custom_call.1} parent=1 // pred_region
      _
    $region21: #{tpu_custom_call.1} parent=1 // pred_fallthru
      _
    %v21 = vld [vmem:[%s0] sm:$0xff]
    %v22 = vld [vmem:[%s0 + $0x8] sm:$0xff]
    %v23 = vld [vmem:[%s1] sm:$0xff]
    %v24 = vld [vmem:[%s1 + $0x8] sm:$0xff]
    %v25 = vld [vmem:[%s2] sm:$0xff]
    %v26 = vld [vmem:[%s2 + $0x8] sm:$0xff]
    %v27 = vld [vmem:[%s2 + $0x10] sm:$0xff]
    %v28 = vld [vmem:[%s2 + $0x18] sm:$0xff]
    %v29 = vld [vmem:[%s2 + $0x20] sm:$0xff]
    %v30 = vld [vmem:[%s2 + $0x28] sm:$0xff]
    %vm31 = vcmask 392192
    %v33 = vsel %vm31, %v21, 0
    %v36 = vsel %vm31, %v22, 0
    %38 = vmatpush.msra.mxu0 0.0
    %39 = vmatpush.msra.mxu0 0.0
    %40 = vmatpush.msra.mxu0 0.0
    %41 = vmatpush.msra.mxu0 0.0
    %42 = vmatpush.msra.mxu0 0.0
    %43 = vmatpush.msra.mxu0 0.0
    %44 = vmatpush.msra.mxu0 0.0
    %45 = vmatpush.msra.mxu0 0.0
    %46 = vmatpush.msra.mxu0 0.0
    %47 = vmatpush.msra.mxu0 0.0
    %48 = vmatpush.msra.mxu0 %v30
    %49 = vmatpush.msra.mxu0 %v29
    %50 = vmatpush.msra.mxu0 %v28
    %51 = vmatpush.msra.mxu0 %v27
    %52 = vmatpush.msra.mxu0 %v26
    %53 = vmatpush.msra.mxu0 %v25
    %54 = vmatmul.f32.gmra.mxu0 %v33
    %v55 = vpop.f32.mrf.mxu0
    %v56 = vadd.f32 0.0, %v55
    %57 = vmatmul.f32.gmra.mxu0 %v36
    %v58 = vpop.f32.mrf.mxu0
    %v59 = vadd.f32 0.0, %v58
    %60 = vdwg.mxu0
    %s61 = scalar_lea.vmem %s2, 48
    %v62 = vld [vmem:[%s61] sm:$0xff]
    %v63 = vld [vmem:[%s61 + $0x8] sm:$0xff]
    %v64 = vld [vmem:[%s61 + $0x10] sm:$0xff]
    %v65 = vld [vmem:[%s61 + $0x18] sm:$0xff]
    %v66 = vld [vmem:[%s61 + $0x20] sm:$0xff]
    %v67 = vld [vmem:[%s61 + $0x28] sm:$0xff]
    %68 = vmatpush.msra.mxu0 0.0
    %69 = vmatpush.msra.mxu0 0.0
    %70 = vmatpush.msra.mxu0 0.0
    %71 = vmatpush.msra.mxu0 0.0
    %72 = vmatpush.msra.mxu0 0.0
    %73 = vmatpush.msra.mxu0 0.0
    %74 = vmatpush.msra.mxu0 0.0
    %75 = vmatpush.msra.mxu0 0.0
    %76 = vmatpush.msra.mxu0 0.0
    %77 = vmatpush.msra.mxu0 0.0
    %78 = vmatpush.msra.mxu0 %v67
    %79 = vmatpush.msra.mxu0 %v66
    %80 = vmatpush.msra.mxu0 %v65
    %81 = vmatpush.msra.mxu0 %v64
    %82 = vmatpush.msra.mxu0 %v63
    %83 = vmatpush.msra.mxu0 %v62
    %84 = vmatmul.f32.gmra.mxu0 %v33
    %v85 = vpop.f32.mrf.mxu0
    %v86 = vadd.f32 0.0, %v85
    %87 = vmatmul.f32.gmra.mxu0 %v36
    %v88 = vpop.f32.mrf.mxu0
    %v89 = vadd.f32 0.0, %v88
    %90 = vdwg.mxu0
    %s91 = scalar_lea.vmem %s2, 96
    %v92 = vld [vmem:[%s91] sm:$0xff]
    %v93 = vld [vmem:[%s91 + $0x8] sm:$0xff]
    %v94 = vld [vmem:[%s91 + $0x10] sm:$0xff]
    %v95 = vld [vmem:[%s91 + $0x18] sm:$0xff]
    %v96 = vld [vmem:[%s91 + $0x20] sm:$0xff]
    %v97 = vld [vmem:[%s91 + $0x28] sm:$0xff]
    %98 = vmatpush.msra.mxu0 0.0
    %99 = vmatpush.msra.mxu0 0.0
    %100 = vmatpush.msra.mxu0 0.0
    %101 = vmatpush.msra.mxu0 0.0
    %102 = vmatpush.msra.mxu0 0.0
    %103 = vmatpush.msra.mxu0 0.0
    %104 = vmatpush.msra.mxu0 0.0
    %105 = vmatpush.msra.mxu0 0.0
    %106 = vmatpush.msra.mxu0 0.0
    %107 = vmatpush.msra.mxu0 0.0
    %108 = vmatpush.msra.mxu0 %v97
    %109 = vmatpush.msra.mxu0 %v96
    %110 = vmatpush.msra.mxu0 %v95
    %111 = vmatpush.msra.mxu0 %v94
    %112 = vmatpush.msra.mxu0 %v93
    %113 = vmatpush.msra.mxu0 %v92
    %114 = vmatmul.f32.gmra.mxu0 %v33
    %v115 = vpop.f32.mrf.mxu0
    %v116 = vadd.f32 0.0, %v115
    %117 = vmatmul.f32.gmra.mxu0 %v36
    %v118 = vpop.f32.mrf.mxu0
    %v119 = vadd.f32 0.0, %v118
    %120 = vdwg.mxu0
    %v121 = vld [vmem:[%s3] sm:$0xff]
    %v122 = vld [vmem:[%s3 + $0x8] sm:$0xff]
    %v123 = vld [vmem:[%s3 + $0x10] sm:$0xff]
    %v124 = vld [vmem:[%s3 + $0x18] sm:$0xff]
    %vm125 = vcmask 261120
    %v127 = vsel %vm125, %v23, 0
    %v130 = vsel %vm125, %v24, 0
    %132 = vmatpush.msra.mxu0 0.0
    %133 = vmatpush.msra.mxu0 0.0
    %134 = vmatpush.msra.mxu0 0.0
    %135 = vmatpush.msra.mxu0 0.0
    %136 = vmatpush.msra.mxu0 0.0
    %137 = vmatpush.msra.mxu0 0.0
    %138 = vmatpush.msra.mxu0 0.0
    %139 = vmatpush.msra.mxu0 0.0
    %140 = vmatpush.msra.mxu0 0.0
    %141 = vmatpush.msra.mxu0 0.0
    %142 = vmatpush.msra.mxu0 0.0
    %143 = vmatpush.msra.mxu0 0.0
    %144 = vmatpush.msra.mxu0 %v124
    %145 = vmatpush.msra.mxu0 %v123
    %146 = vmatpush.msra.mxu0 %v122
    %147 = vmatpush.msra.mxu0 %v121
    %148 = vmatmul.f32.gmra.mxu0 %v127
    %v149 = vpop.f32.mrf.mxu0
    %v150 = vadd.f32 0.0, %v149
    %151 = vmatmul.f32.gmra.mxu0 %v130
    %v152 = vpop.f32.mrf.mxu0
    %v153 = vadd.f32 0.0, %v152
    %154 = vdwg.mxu0
    %s155 = scalar_lea.vmem %s3, 32
    %v156 = vld [vmem:[%s155] sm:$0xff]
    %v157 = vld [vmem:[%s155 + $0x8] sm:$0xff]
    %v158 = vld [vmem:[%s155 + $0x10] sm:$0xff]
    %v159 = vld [vmem:[%s155 + $0x18] sm:$0xff]
    %160 = vmatpush.msra.mxu0 0.0
    %161 = vmatpush.msra.mxu0 0.0
    %162 = vmatpush.msra.mxu0 0.0
    %163 = vmatpush.msra.mxu0 0.0
    %164 = vmatpush.msra.mxu0 0.0
    %165 = vmatpush.msra.mxu0 0.0
    %166 = vmatpush.msra.mxu0 0.0
    %167 = vmatpush.msra.mxu0 0.0
    %168 = vmatpush.msra.mxu0 0.0
    %169 = vmatpush.msra.mxu0 0.0
    %170 = vmatpush.msra.mxu0 0.0
    %171 = vmatpush.msra.mxu0 0.0
    %172 = vmatpush.msra.mxu0 %v159
    %173 = vmatpush.msra.mxu0 %v158
    %174 = vmatpush.msra.mxu0 %v157
    %175 = vmatpush.msra.mxu0 %v156
    %176 = vmatmul.f32.gmra.mxu0 %v127
    %v177 = vpop.f32.mrf.mxu0
    %v178 = vadd.f32 0.0, %v177
    %179 = vmatmul.f32.gmra.mxu0 %v130
    %v180 = vpop.f32.mrf.mxu0
    %v181 = vadd.f32 0.0, %v180
    %182 = vdwg.mxu0
    %s183 = scalar_lea.vmem %s3, 64
    %v184 = vld [vmem:[%s183] sm:$0xff]
    %v185 = vld [vmem:[%s183 + $0x8] sm:$0xff]
    %v186 = vld [vmem:[%s183 + $0x10] sm:$0xff]
    %v187 = vld [vmem:[%s183 + $0x18] sm:$0xff]
    %188 = vmatpush.msra.mxu0 0.0
    %189 = vmatpush.msra.mxu0 0.0
    %190 = vmatpush.msra.mxu0 0.0
    %191 = vmatpush.msra.mxu0 0.0
    %192 = vmatpush.msra.mxu0 0.0
    %193 = vmatpush.msra.mxu0 0.0
    %194 = vmatpush.msra.mxu0 0.0
    %195 = vmatpush.msra.mxu0 0.0
    %196 = vmatpush.msra.mxu0 0.0
    %197 = vmatpush.msra.mxu0 0.0
    %198 = vmatpush.msra.mxu0 0.0
    %199 = vmatpush.msra.mxu0 0.0
    %200 = vmatpush.msra.mxu0 %v187
    %201 = vmatpush.msra.mxu0 %v186
    %202 = vmatpush.msra.mxu0 %v185
    %203 = vmatpush.msra.mxu0 %v184
    %204 = vmatmul.f32.gmra.mxu0 %v127
    %v205 = vpop.f32.mrf.mxu0
    %v206 = vadd.f32 0.0, %v205
    %207 = vmatmul.f32.gmra.mxu0 %v130
    %v208 = vpop.f32.mrf.mxu0
    %v209 = vadd.f32 0.0, %v208
    %210 = vdwg.mxu0
    %v211 = vld [vmem:[%s4] sm:$0x1]
    %s212 = scalar_lea.vmem %s4, 1
    %v213 = vld [vmem:[%s212] sm:$0x1]
    %s214 = scalar_lea.vmem %s4, 2
    %v215 = vld [vmem:[%s214] sm:$0x1]
    %v217 = vperm.slane %v211, 0
    %v219 = vmul.f32 %v217, %v56
    %v220 = vmul.f32 %v217, %v59
    %v221 = vmul.f32 %v219, %v150
    %v222 = vmul.f32 %v220, %v153
    %v223 = vsub.f32 0.0, %v221
    %v224 = vsub.f32 0.0, %v222
    %v225 = vmul.f32 %v223, 1.442695
    %v226 = vpow.pop %v225
    %v227 = vmul.f32 %v224, 1.442695
    %v228 = vpow.pop %v227
    %v229 = vadd.f32 %v226, 1.0
    %v230 = vadd.f32 %v228, 1.0
    %v231 = vrcp.pop %v229
    %v232 = vrcp.pop %v230
    %v234 = vperm.slane %v213, 0
    %v236 = vmul.f32 %v234, %v86
    %v237 = vmul.f32 %v234, %v89
    %v238 = vmul.f32 %v236, %v178
    %v239 = vmul.f32 %v237, %v181
    %v240 = vsub.f32 0.0, %v238
    %v241 = vsub.f32 0.0, %v239
    %v242 = vmul.f32 %v240, 1.442695
    %v243 = vpow.pop %v242
    %v244 = vmul.f32 %v241, 1.442695
    %v245 = vpow.pop %v244
    %v246 = vadd.f32 %v243, 1.0
    %v247 = vadd.f32 %v245, 1.0
    %v248 = vrcp.pop %v246
    %v249 = vrcp.pop %v247
    %v251 = vperm.slane %v215, 0
    %v253 = vmul.f32 %v251, %v116
    %v254 = vmul.f32 %v251, %v119
    %v255 = vmul.f32 %v231, %v206
    %v256 = vmul.f32 %v232, %v209
    %v257 = vmul.f32 %v253, %v255
    %v258 = vmul.f32 %v254, %v256
    %v259 = vsub.f32 0.0, %v257
    %v260 = vsub.f32 0.0, %v258
    %v261 = vmul.f32 %v259, 1.442695
    %v262 = vpow.pop %v261
    %v263 = vmul.f32 %v260, 1.442695
    %v264 = vpow.pop %v263
    %v265 = vadd.f32 %v262, 1.0
    %v266 = vadd.f32 %v264, 1.0
    %v267 = vlog2.pop %v265
    %v268 = vmul.f32 %v267, 0.6931472
    %v269 = vlog2.pop %v266
    %v270 = vmul.f32 %v269, 0.6931472
    %v271 = vadd.f32 %v257, %v268
    %v272 = vadd.f32 %v258, %v270
    %v273 = vsub.f32 1.0, %v248
    %v274 = vsub.f32 1.0, %v249
    %v275 = vlog2.pop %v271
    %v276 = vmul.f32 %v275, 0.6931472
    %v277 = vlog2.pop %v272
    %v278 = vmul.f32 %v277, 0.6931472
    %v279 = vmul.f32 %v273, %v276
    %v280 = vmul.f32 %v274, %v278
    %v281 = vlog2.pop %v23
    %v282 = vmul.f32 %v281, 0.6931472
    %v283 = vlog2.pop %v24
    %v284 = vmul.f32 %v283, 0.6931472
    %v285 = vmul.f32 %v248, %v282
    %v286 = vmul.f32 %v249, %v284
    %v287 = vadd.f32 %v279, %v285
    %v288 = vadd.f32 %v280, %v286
    %v289 = vmul.f32 %v287, 1.442695
    %v290 = vpow.pop %v289
    %v291 = vmul.f32 %v288, 1.442695
    %v292 = vpow.pop %v291
    %293 = vst.msk [vmem:[#allocation2] sm:$0xff] %vm125, %v290
    %294 = vst.msk [vmem:[#allocation2 + $0x8] sm:$0xff] %vm125, %v292
    // Predicated region
    $region22: #{tpu_custom_call.1} parent=1 // pred_check
      _
    $region23: #{tpu_custom_call.1} parent=1 // pred_check_branch
      %296 = sbr.rel (0) target = $region25
    $region24: #{tpu_custom_call.1} parent=1 // pred_region
      %298 = vsyncadd [#allocation3], 0
      %s299 = sshll.u32 [#allocation2], 4
      %s300 = int_to_ptr.vmem [resolvable:$true] %s299
      %s301 = sshll.u32 %s5, 4
      %s302 = int_to_ptr.hbm [resolvable:$true] %s301
      %307 = dma.vmem_to_hbm [thread:$0]  %s300, 256, %s302, [#allocation3], 128, 128, 8
    $region25: #{tpu_custom_call.1} parent=1 // pred_fallthru
      _
    // Predicated region
    $region26: #{tpu_custom_call.1} parent=1 // pred_check
      _
    $region27: #{tpu_custom_call.1} parent=1 // pred_check_branch
      %309 = sbr.rel (0) target = $region29
    $region28: #{tpu_custom_call.1} parent=1 // pred_region
      %311 = dma.done [#allocation3], 256
    $region29: #{tpu_custom_call.1} parent=1 // pred_fallthru
      _
    %312 = vsyncpa [#allocation3], 1

</llo_original>
